<compile_context>
chip_gen: v5e
topology: v5e:2x2
jax: 0.10.0
libtpu: 0.0.40
codegen_flags: <defaults>
</compile_context>

<pallas_src>
import functools

import jax
import jax.numpy as jnp
from jax.experimental import pallas as pl
from jax.experimental.pallas import tpu as pltpu

LEAKY_SLOPE = 0.01
BN_EPS = 1e-5


# --------------------------------------------------------------------------------------
# In-kernel building block: one conv3x3 + BN(batch stats) + LeakyReLU, fully lane-packed.
# --------------------------------------------------------------------------------------
def _layer(pad_ref, wb_ref, avg_ref, gamma_ref, beta_ref):
    """pad_ref  : (N, H+2, W*Cin)  H-zero-padded, lane-packed input (VMEM)
       wb_ref   : (3, W*Cin, W*Cout) row-banded conv weights (one block per dy tap)
       avg_ref  : (W*Cout, W*Cout)  projection averaging packed lanes within a channel
       gamma_ref, beta_ref : (1, W*Cout) BN affine params, pre-broadcast to packed lanes
       returns  : (N*H, W*Cout) f32 activation
    """
    n, hp2, wcin = pad_ref.shape
    h = hp2 - 2
    wcout = wb_ref.shape[2]
    nh = n * h

    # 3x3 conv: dx taps + Cin contraction are folded into the banded weights, so only
    # the 3 dy taps remain -> 3 accumulating MXU matmuls (instead of 9 tiny ones).
    acc = jnp.zeros((nh, wcout), jnp.float32)
    for dy in range(3):
        rows = jnp.reshape(pad_ref[:, dy:dy + h, :], (nh, wcin))
        acc = acc + jnp.dot(rows, wb_ref[dy], preferred_element_type=jnp.float32)
    # NOTE: the conv bias is intentionally not added: training-mode BatchNorm is
    # invariant to a per-channel additive constant, so it cancels exactly.
    # TODO(synk): on v6e/v7x, `rows`/`wb` could be cast to bf16 for ~2x MXU throughput,
    #             but that perturbs results beyond the 1e-4 check vs the f32 reference.

    # BatchNorm2d, training-mode (biased) batch statistics over (N, H, W) per channel,
    # computed directly in the packed-lane layout via the channel-averaging projection.
    m_col = jnp.mean(acc, axis=0, keepdims=True)                      # (1, W*Cout)
    m_pk = jnp.dot(m_col, avg_ref[...], preferred_element_type=jnp.float32)
    cent = acc - m_pk                                                 # stable 2-pass var
    v_col = jnp.mean(cent * cent, axis=0, keepdims=True)
    v_pk = jnp.dot(v_col, avg_ref[...], preferred_element_type=jnp.float32)

    # Single fused scale/shift + LeakyReLU pass over the activation.
    scale = gamma_ref[...] * jax.lax.rsqrt(v_pk + BN_EPS)             # (1, W*Cout)
    y = cent * scale + beta_ref[...]
    return jnp.where(y > 0, y, LEAKY_SLOPE * y)


def _finconv_kernel(x_ref, wb1_ref, a1_ref, g1_ref, b1_ref,
                    wb2_ref, a2_ref, g2_ref, b2_ref,
                    o_ref, xpad_ref, ypad_ref):
    n, h, _ = x_ref.shape
    wc1 = ypad_ref.shape[2]

    # Stage the input once into an H-zero-padded VMEM scratch (no wrapper jnp.pad /
    # extra HBM pass).  W padding is absorbed by the banded weights -> lanes stay dense.
    xpad_ref[...] = jnp.zeros(xpad_ref.shape, xpad_ref.dtype)
    xpad_ref[:, 1:h + 1, :] = x_ref[...]

    y1 = _layer(xpad_ref, wb1_ref, a1_ref, g1_ref, b1_ref)            # (N*H, W*C1)

    # Fused layers: the layer-1 activation never leaves VMEM.
    ypad_ref[...] = jnp.zeros(ypad_ref.shape, ypad_ref.dtype)
    ypad_ref[:, 1:h + 1, :] = jnp.reshape(y1, (n, h, wc1))

    y2 = _layer(ypad_ref, wb2_ref, a2_ref, g2_ref, b2_ref)            # (N*H, W*Cin)

    # Lane-packed output store: last dim is W*Cin, not Cin.
    o_ref[...] = jnp.reshape(y2, o_ref.shape).astype(o_ref.dtype)


# --------------------------------------------------------------------------------------
# Wrapper-side weight / parameter layout transforms (independent of x).
# --------------------------------------------------------------------------------------
def _banded_weights(w_hwio, width):
    """(3, 3, Cin, Cout) -> (3, width*Cin, width*Cout) row-banded (block-Toeplitz)
    weights: output column q contracts against input columns q-1, q, q+1; the W zero
    padding is realized by simply dropping the out-of-range taps."""
    kh, kw, cin, cout = w_hwio.shape
    p = jnp.arange(width)[:, None]            # input column
    q = jnp.arange(width)[None, :]            # output column
    dx = p - q + 1                            # horizontal tap index
    valid = (dx >= 0) & (dx < kw)
    g = w_hwio[:, jnp.clip(dx, 0, kw - 1)]    # (kh, width, width, cin, cout)
    g = jnp.where(valid[None, :, :, None, None], g, 0.0)
    g = jnp.transpose(g, (0, 1, 3, 2, 4))     # (kh, width, cin, width, cout)
    return jnp.reshape(g, (kh, width * cin, width * cout))


def _channel_avg_matrix(width, c):
    """(width*c, width*c) projection: averages packed lanes (w, c) within each channel c
    and broadcasts the result back to every packed position of that channel."""
    return jnp.tile(jnp.eye(c, dtype=jnp.float32), (width, width)) / width


def _pack_per_channel(v, width):
    """(c,) per-channel vector -> (1, width*c) broadcast across packed W positions."""
    return jnp.tile(jnp.reshape(v, (1, -1)), (1, width))


def fin_conv_forward(x_nchw, params):
    """FinConv.forward. x_nchw: (N, Cin, H, W) -> (N, Cin, H, W)."""
    n, cin, h, w = x_nchw.shape
    cout = params["w1"].shape[-1]

    # NCHW -> lane-packed (N, H, W*Cin).  The reshape after the (materialized)
    # transpose is contiguous and free; the kernel sees a dense lane dimension.
    x_packed = jnp.reshape(jnp.transpose(x_nchw, (0, 2, 3, 1)), (n, h, w * cin))

    wb1 = _banded_weights(params["w1"], w)                 # (3, W*cin, W*cout)
    wb2 = _banded_weights(params["w2"], w)                 # (3, W*cout, W*cin)
    a1 = _channel_avg_matrix(w, cout)                      # (W*cout, W*cout)
    a2 = _channel_avg_matrix(w, cin)                       # (W*cin,  W*cin)
    g1 = _pack_per_channel(params["g1"], w)                # (1, W*cout)
    be1 = _pack_per_channel(params["be1"], w)
    g2 = _pack_per_channel(params["g2"], w)                # (1, W*cin)
    be2 = _pack_per_channel(params["be2"], w)

    out_packed = pl.pallas_call(
        _finconv_kernel,
        out_shape=jax.ShapeDtypeStruct((n, h, w * cin), x_nchw.dtype),
        grid=(1,),
        in_specs=[
            pl.BlockSpec((n, h, w * cin), lambda i: (0, 0, 0)),
            pl.BlockSpec(wb1.shape, lambda i: (0, 0, 0)),
            pl.BlockSpec(a1.shape, lambda i: (0, 0)),
            pl.BlockSpec(g1.shape, lambda i: (0, 0)),
            pl.BlockSpec(be1.shape, lambda i: (0, 0)),
            pl.BlockSpec(wb2.shape, lambda i: (0, 0, 0)),
            pl.BlockSpec(a2.shape, lambda i: (0, 0)),
            pl.BlockSpec(g2.shape, lambda i: (0, 0)),
            pl.BlockSpec(be2.shape, lambda i: (0, 0)),
        ],
        out_specs=pl.BlockSpec((n, h, w * cin), lambda i: (0, 0, 0)),
        scratch_shapes=[
            pltpu.VMEM((n, h + 2, w * cin), jnp.float32),   # H-padded packed input
            pltpu.VMEM((n, h + 2, w * cout), jnp.float32),  # H-padded layer-1 activation
        ],
        compiler_params=pltpu.CompilerParams(
            dimension_semantics=("arbitrary",)),
        # TODO(synk): for larger N/H, add a leading "parallel" grid axis (partial BN
        #             statistics + finalize) so v7x's second TensorCore is used.
    )(x_packed, wb1, a1, g1, be1, wb2, a2, g2, be2)

    # (N, H, W*Cin) -> NHWC (free reshape) -> NCHW (required by the module contract).
    return jnp.transpose(jnp.reshape(out_packed, (n, h, w, cin)), (0, 3, 1, 2))


# ---------------- pure-JAX reference (for correctness check) ----------------
def _ref_layer(x_nhwc, w_hwio, bias, gamma, beta):
    y = jax.lax.conv_general_dilated(
        x_nhwc, w_hwio, window_strides=(1, 1), padding="SAME",
        dimension_numbers=("NHWC", "HWIO", "NHWC"))
    y = y + bias[None, None, None, :]
    mean = jnp.mean(y, axis=(0, 1, 2), keepdims=True)
    var = jnp.mean((y - mean) ** 2, axis=(0, 1, 2), keepdims=True)
    y = (y - mean) * jax.lax.rsqrt(var + BN_EPS)
    y = y * gamma[None, None, None, :] + beta[None, None, None, :]
    return jnp.where(y > 0, y, LEAKY_SLOPE * y)


def _ref_forward(x_nchw, p):
    x = jnp.transpose(x_nchw, (0, 2, 3, 1))
    x = _ref_layer(x, p["w1"], p["b1"], p["g1"], p["be1"])
    x = _ref_layer(x, p["w2"], p["b2"], p["g2"], p["be2"])
    return jnp.transpose(x, (0, 3, 1, 2))


def make_params(key, in_channels, out_channels):
    ks = jax.random.split(key, 8)
    return {
        # conv1: in -> out ; conv2: out -> in (HWIO layout)
        "w1": 0.1 * jax.random.normal(ks[0], (3, 3, in_channels, out_channels), jnp.float32),
        "b1": 0.1 * jax.random.normal(ks[1], (out_channels,), jnp.float32),
        "g1": 1.0 + 0.1 * jax.random.normal(ks[2], (out_channels,), jnp.float32),
        "be1": 0.1 * jax.random.normal(ks[3], (out_channels,), jnp.float32),
        "w2": 0.1 * jax.random.normal(ks[4], (3, 3, out_channels, in_channels), jnp.float32),
        "b2": 0.1 * jax.random.normal(ks[5], (in_channels,), jnp.float32),
        "g2": 1.0 + 0.1 * jax.random.normal(ks[6], (in_channels,), jnp.float32),
        "be2": 0.1 * jax.random.normal(ks[7], (in_channels,), jnp.float32),
    }


if __name__ == "__main__":
    key = jax.random.PRNGKey(0)
    k_x, k_p = jax.random.split(key)

    N, C_IN, C_OUT, H, W = 2, 4, 8, 16, 16
    x = jax.random.normal(k_x, (N, C_IN, H, W), jnp.float32)   # PyTorch NCHW input
    params = make_params(k_p, C_IN, C_OUT)

    out = jax.block_until_ready(
        jax.jit(functools.partial(fin_conv_forward, params=params))(x))
    ref = jax.block_until_ready(_ref_forward(x, params))

    assert out.shape == (N, C_IN, H, W), out.shape
    assert jnp.allclose(out, ref, rtol=1e-4, atol=1e-4), float(jnp.max(jnp.abs(out - ref)))
    print("KERNEL_OK")
</pallas_src>

<mosaic_0001>
module attributes {stable_mosaic.version = 11 : i64} {
  func.func @_finconv_kernel(%arg0: i32, %arg1: memref<2x16x64xf32, #tpu.memory_space<vmem>>, %arg2: memref<3x64x128xf32, #tpu.memory_space<vmem>>, %arg3: memref<128x128xf32, #tpu.memory_space<vmem>>, %arg4: memref<1x128xf32, #tpu.memory_space<vmem>>, %arg5: memref<1x128xf32, #tpu.memory_space<vmem>>, %arg6: memref<3x128x64xf32, #tpu.memory_space<vmem>>, %arg7: memref<64x64xf32, #tpu.memory_space<vmem>>, %arg8: memref<1x64xf32, #tpu.memory_space<vmem>>, %arg9: memref<1x64xf32, #tpu.memory_space<vmem>>, %arg10: memref<2x16x64xf32, #tpu.memory_space<vmem>>, %arg11: memref<2x18x64xf32, #tpu.memory_space<vmem>>, %arg12: memref<2x18x128xf32, #tpu.memory_space<vmem>>) attributes {dimension_semantics = [#tpu.dimension_semantics<arbitrary>], iteration_bounds = array<i64: 1>, scalar_prefetch = 0 : i64, scratch_operands = 2 : i64, tpu.core_type = #tpu.core_type<tc>, window_params = [{pipeline_mode = #tpu.pipeline_mode<synchronous>, transform_indices = @transform_0, window_bounds = array<i64: 2, 16, 64>}, {pipeline_mode = #tpu.pipeline_mode<synchronous>, transform_indices = @transform_1, window_bounds = array<i64: 3, 64, 128>}, {pipeline_mode = #tpu.pipeline_mode<synchronous>, transform_indices = @transform_2, window_bounds = array<i64: 128, 128>}, {pipeline_mode = #tpu.pipeline_mode<synchronous>, transform_indices = @transform_3, window_bounds = array<i64: 1, 128>}, {pipeline_mode = #tpu.pipeline_mode<synchronous>, transform_indices = @transform_4, window_bounds = array<i64: 1, 128>}, {pipeline_mode = #tpu.pipeline_mode<synchronous>, transform_indices = @transform_5, window_bounds = array<i64: 3, 128, 64>}, {pipeline_mode = #tpu.pipeline_mode<synchronous>, transform_indices = @transform_6, window_bounds = array<i64: 64, 64>}, {pipeline_mode = #tpu.pipeline_mode<synchronous>, transform_indices = @transform_7, window_bounds = array<i64: 1, 64>}, {pipeline_mode = #tpu.pipeline_mode<synchronous>, transform_indices = @transform_8, window_bounds = array<i64: 1, 64>}, {pipeline_mode = #tpu.pipeline_mode<synchronous>, transform_indices = @transform_9, window_bounds = array<i64: 2, 16, 64>}]} {
    %cst = arith.constant 0.000000e+00 : f32
    %0 = vector.broadcast %cst : f32 to vector<2x18x64xf32>
    %c0 = arith.constant 0 : index
    %c0_0 = arith.constant 0 : index
    %c0_1 = arith.constant 0 : index
    %1 = vector.load %arg11[%c0, %c0_0, %c0_1] : memref<2x18x64xf32, #tpu.memory_space<vmem>>, vector<2x18x64xf32>
    tpu.vector_store %arg11[%c0, %c0_0, %c0_1], %0 {strides = array<i32>} : memref<2x18x64xf32, #tpu.memory_space<vmem>>, vector<2x18x64xf32>,
    %c0_2 = arith.constant 0 : index
    %c0_3 = arith.constant 0 : index
    %c0_4 = arith.constant 0 : index
    %2 = vector.load %arg1[%c0_2, %c0_3, %c0_4] : memref<2x16x64xf32, #tpu.memory_space<vmem>>, vector<2x16x64xf32>
    %c0_5 = arith.constant 0 : index
    %c1 = arith.constant 1 : index
    %c0_6 = arith.constant 0 : index
    %3 = vector.load %arg11[%c0_5, %c1, %c0_6] : memref<2x18x64xf32, #tpu.memory_space<vmem>>, vector<2x16x64xf32>
    tpu.vector_store %arg11[%c0_5, %c1, %c0_6], %2 {strides = array<i32>} : memref<2x18x64xf32, #tpu.memory_space<vmem>>, vector<2x16x64xf32>,
    %cst_7 = arith.constant 0.000000e+00 : f32
    %4 = vector.broadcast %cst_7 : f32 to vector<32x128xf32>
    %c0_8 = arith.constant 0 : index
    %c0_9 = arith.constant 0 : index
    %c0_10 = arith.constant 0 : index
    %5 = vector.load %arg11[%c0_8, %c0_9, %c0_10] : memref<2x18x64xf32, #tpu.memory_space<vmem>>, vector<2x16x64xf32>
    %6 = vector.shape_cast %5 : vector<2x16x64xf32> to vector<32x64xf32>
    %c0_11 = arith.constant 0 : index
    %c0_12 = arith.constant 0 : index
    %c0_13 = arith.constant 0 : index
    %7 = vector.load %arg2[%c0_11, %c0_12, %c0_13] : memref<3x64x128xf32, #tpu.memory_space<vmem>>, vector<1x64x128xf32>
    %8 = vector.shape_cast %7 : vector<1x64x128xf32> to vector<64x128xf32>
    %cst_14 = arith.constant dense<0.000000e+00> : vector<32x128xf32>
    %9 = tpu.matmul %6, %8, %cst_14 {dimension_numbers = #tpu.dot_dimension_numbers<[1], [0], [0], [1], [0, 0, 1, 1], [], []>} : vector<32x64xf32>, vector<64x128xf32>, vector<32x128xf32> -> vector<32x128xf32>
    %10 = arith.addf %4, %9 : vector<32x128xf32>
    %c0_15 = arith.constant 0 : index
    %c1_16 = arith.constant 1 : index
    %c0_17 = arith.constant 0 : index
    %11 = vector.load %arg11[%c0_15, %c1_16, %c0_17] : memref<2x18x64xf32, #tpu.memory_space<vmem>>, vector<2x16x64xf32>
    %12 = vector.shape_cast %11 : vector<2x16x64xf32> to vector<32x64xf32>
    %c1_18 = arith.constant 1 : index
    %c0_19 = arith.constant 0 : index
    %c0_20 = arith.constant 0 : index
    %13 = vector.load %arg2[%c1_18, %c0_19, %c0_20] : memref<3x64x128xf32, #tpu.memory_space<vmem>>, vector<1x64x128xf32>
    %14 = vector.shape_cast %13 : vector<1x64x128xf32> to vector<64x128xf32>
    %cst_21 = arith.constant dense<0.000000e+00> : vector<32x128xf32>
    %15 = tpu.matmul %12, %14, %cst_21 {dimension_numbers = #tpu.dot_dimension_numbers<[1], [0], [0], [1], [0, 0, 1, 1], [], []>} : vector<32x64xf32>, vector<64x128xf32>, vector<32x128xf32> -> vector<32x128xf32>
    %16 = arith.addf %10, %15 : vector<32x128xf32>
    %c0_22 = arith.constant 0 : index
    %c2 = arith.constant 2 : index
    %c0_23 = arith.constant 0 : index
    %17 = vector.load %arg11[%c0_22, %c2, %c0_23] : memref<2x18x64xf32, #tpu.memory_space<vmem>>, vector<2x16x64xf32>
    %18 = vector.shape_cast %17 : vector<2x16x64xf32> to vector<32x64xf32>
    %c2_24 = arith.constant 2 : index
    %c0_25 = arith.constant 0 : index
    %c0_26 = arith.constant 0 : index
    %19 = vector.load %arg2[%c2_24, %c0_25, %c0_26] : memref<3x64x128xf32, #tpu.memory_space<vmem>>, vector<1x64x128xf32>
    %20 = vector.shape_cast %19 : vector<1x64x128xf32> to vector<64x128xf32>
    %cst_27 = arith.constant dense<0.000000e+00> : vector<32x128xf32>
    %21 = tpu.matmul %18, %20, %cst_27 {dimension_numbers = #tpu.dot_dimension_numbers<[1], [0], [0], [1], [0, 0, 1, 1], [], []>} : vector<32x64xf32>, vector<64x128xf32>, vector<32x128xf32> -> vector<32x128xf32>
    %22 = arith.addf %16, %21 : vector<32x128xf32>
    %cst_28 = arith.constant dense<0.000000e+00> : vector<128xf32>
    %23 = vector.multi_reduction <add>, %22, %cst_28 [0] : vector<32x128xf32> to vector<128xf32>
    %24 = vector.shape_cast %23 : vector<128xf32> to vector<1x128xf32>
    %cst_29 = arith.constant 3.200000e+01 : f32
    %25 = vector.broadcast %cst_29 : f32 to vector<1x128xf32>
    %26 = arith.divf %24, %25 : vector<1x128xf32>
    %c0_30 = arith.constant 0 : index
    %c0_31 = arith.constant 0 : index
    %27 = vector.load %arg3[%c0_30, %c0_31] : memref<128x128xf32, #tpu.memory_space<vmem>>, vector<128x128xf32>
    %cst_32 = arith.constant dense<0.000000e+00> : vector<1x128xf32>
    %28 = tpu.matmul %26, %27, %cst_32 {dimension_numbers = #tpu.dot_dimension_numbers<[1], [0], [0], [1], [0, 0, 1, 1], [], []>} : vector<1x128xf32>, vector<128x128xf32>, vector<1x128xf32> -> vector<1x128xf32>
    %29 = vector.broadcast %28 : vector<1x128xf32> to vector<32x128xf32>
    %30 = arith.subf %22, %29 : vector<32x128xf32>
    %31 = arith.mulf %30, %30 : vector<32x128xf32>
    %cst_33 = arith.constant dense<0.000000e+00> : vector<128xf32>
    %32 = vector.multi_reduction <add>, %31, %cst_33 [0] : vector<32x128xf32> to vector<128xf32>
    %33 = vector.shape_cast %32 : vector<128xf32> to vector<1x128xf32>
    %cst_34 = arith.constant 3.200000e+01 : f32
    %34 = vector.broadcast %cst_34 : f32 to vector<1x128xf32>
    %35 = arith.divf %33, %34 : vector<1x128xf32>
    %c0_35 = arith.constant 0 : index
    %c0_36 = arith.constant 0 : index
    %36 = vector.load %arg3[%c0_35, %c0_36] : memref<128x128xf32, #tpu.memory_space<vmem>>, vector<128x128xf32>
    %cst_37 = arith.constant dense<0.000000e+00> : vector<1x128xf32>
    %37 = tpu.matmul %35, %36, %cst_37 {dimension_numbers = #tpu.dot_dimension_numbers<[1], [0], [0], [1], [0, 0, 1, 1], [], []>} : vector<1x128xf32>, vector<128x128xf32>, vector<1x128xf32> -> vector<1x128xf32>
    %c0_38 = arith.constant 0 : index
    %c0_39 = arith.constant 0 : index
    %38 = vector.load %arg4[%c0_38, %c0_39] : memref<1x128xf32, #tpu.memory_space<vmem>>, vector<1x128xf32>
    %cst_40 = arith.constant 9.99999974E-6 : f32
    %39 = vector.broadcast %cst_40 : f32 to vector<1x128xf32>
    %40 = arith.addf %37, %39 : vector<1x128xf32>
    %41 = math.rsqrt %40 : vector<1x128xf32>
    %42 = arith.mulf %38, %41 : vector<1x128xf32>
    %43 = vector.broadcast %42 : vector<1x128xf32> to vector<32x128xf32>
    %44 = arith.mulf %30, %43 : vector<32x128xf32>
    %c0_41 = arith.constant 0 : index
    %c0_42 = arith.constant 0 : index
    %45 = vector.load %arg5[%c0_41, %c0_42] : memref<1x128xf32, #tpu.memory_space<vmem>>, vector<1x128xf32>
    %46 = vector.broadcast %45 : vector<1x128xf32> to vector<32x128xf32>
    %47 = arith.addf %44, %46 : vector<32x128xf32>
    %cst_43 = arith.constant 0.000000e+00 : f32
    %48 = vector.broadcast %cst_43 : f32 to vector<32x128xf32>
    %49 = arith.cmpf ogt, %47, %48 : vector<32x128xf32>
    %cst_44 = arith.constant 0.00999999977 : f32
    %50 = vector.broadcast %cst_44 : f32 to vector<32x128xf32>
    %51 = arith.mulf %50, %47 : vector<32x128xf32>
    %52 = arith.select %49, %47, %51 : vector<32x128xi1>, vector<32x128xf32>
    %cst_45 = arith.constant 0.000000e+00 : f32
    %53 = vector.broadcast %cst_45 : f32 to vector<2x18x128xf32>
    %c0_46 = arith.constant 0 : index
    %c0_47 = arith.constant 0 : index
    %c0_48 = arith.constant 0 : index
    %54 = vector.load %arg12[%c0_46, %c0_47, %c0_48] : memref<2x18x128xf32, #tpu.memory_space<vmem>>, vector<2x18x128xf32>
    tpu.vector_store %arg12[%c0_46, %c0_47, %c0_48], %53 {strides = array<i32>} : memref<2x18x128xf32, #tpu.memory_space<vmem>>, vector<2x18x128xf32>,
    %55 = vector.shape_cast %52 : vector<32x128xf32> to vector<2x16x128xf32>
    %c0_49 = arith.constant 0 : index
    %c1_50 = arith.constant 1 : index
    %c0_51 = arith.constant 0 : index
    %56 = vector.load %arg12[%c0_49, %c1_50, %c0_51] : memref<2x18x128xf32, #tpu.memory_space<vmem>>, vector<2x16x128xf32>
    tpu.vector_store %arg12[%c0_49, %c1_50, %c0_51], %55 {strides = array<i32>} : memref<2x18x128xf32, #tpu.memory_space<vmem>>, vector<2x16x128xf32>,
    %cst_52 = arith.constant 0.000000e+00 : f32
    %57 = vector.broadcast %cst_52 : f32 to vector<32x64xf32>
    %c0_53 = arith.constant 0 : index
    %c0_54 = arith.constant 0 : index
    %c0_55 = arith.constant 0 : index
    %58 = vector.load %arg12[%c0_53, %c0_54, %c0_55] : memref<2x18x128xf32, #tpu.memory_space<vmem>>, vector<2x16x128xf32>
    %59 = vector.shape_cast %58 : vector<2x16x128xf32> to vector<32x128xf32>
    %c0_56 = arith.constant 0 : index
    %c0_57 = arith.constant 0 : index
    %c0_58 = arith.constant 0 : index
    %60 = vector.load %arg6[%c0_56, %c0_57, %c0_58] : memref<3x128x64xf32, #tpu.memory_space<vmem>>, vector<1x128x64xf32>
    %61 = vector.shape_cast %60 : vector<1x128x64xf32> to vector<128x64xf32>
    %cst_59 = arith.constant dense<0.000000e+00> : vector<32x64xf32>
    %62 = tpu.matmul %59, %61, %cst_59 {dimension_numbers = #tpu.dot_dimension_numbers<[1], [0], [0], [1], [0, 0, 1, 1], [], []>} : vector<32x128xf32>, vector<128x64xf32>, vector<32x64xf32> -> vector<32x64xf32>
    %63 = arith.addf %57, %62 : vector<32x64xf32>
    %c0_60 = arith.constant 0 : index
    %c1_61 = arith.constant 1 : index
    %c0_62 = arith.constant 0 : index
    %64 = vector.load %arg12[%c0_60, %c1_61, %c0_62] : memref<2x18x128xf32, #tpu.memory_space<vmem>>, vector<2x16x128xf32>
    %65 = vector.shape_cast %64 : vector<2x16x128xf32> to vector<32x128xf32>
    %c1_63 = arith.constant 1 : index
    %c0_64 = arith.constant 0 : index
    %c0_65 = arith.constant 0 : index
    %66 = vector.load %arg6[%c1_63, %c0_64, %c0_65] : memref<3x128x64xf32, #tpu.memory_space<vmem>>, vector<1x128x64xf32>
    %67 = vector.shape_cast %66 : vector<1x128x64xf32> to vector<128x64xf32>
    %cst_66 = arith.constant dense<0.000000e+00> : vector<32x64xf32>
    %68 = tpu.matmul %65, %67, %cst_66 {dimension_numbers = #tpu.dot_dimension_numbers<[1], [0], [0], [1], [0, 0, 1, 1], [], []>} : vector<32x128xf32>, vector<128x64xf32>, vector<32x64xf32> -> vector<32x64xf32>
    %69 = arith.addf %63, %68 : vector<32x64xf32>
    %c0_67 = arith.constant 0 : index
    %c2_68 = arith.constant 2 : index
    %c0_69 = arith.constant 0 : index
    %70 = vector.load %arg12[%c0_67, %c2_68, %c0_69] : memref<2x18x128xf32, #tpu.memory_space<vmem>>, vector<2x16x128xf32>
    %71 = vector.shape_cast %70 : vector<2x16x128xf32> to vector<32x128xf32>
    %c2_70 = arith.constant 2 : index
    %c0_71 = arith.constant 0 : index
    %c0_72 = arith.constant 0 : index
    %72 = vector.load %arg6[%c2_70, %c0_71, %c0_72] : memref<3x128x64xf32, #tpu.memory_space<vmem>>, vector<1x128x64xf32>
    %73 = vector.shape_cast %72 : vector<1x128x64xf32> to vector<128x64xf32>
    %cst_73 = arith.constant dense<0.000000e+00> : vector<32x64xf32>
    %74 = tpu.matmul %71, %73, %cst_73 {dimension_numbers = #tpu.dot_dimension_numbers<[1], [0], [0], [1], [0, 0, 1, 1], [], []>} : vector<32x128xf32>, vector<128x64xf32>, vector<32x64xf32> -> vector<32x64xf32>
    %75 = arith.addf %69, %74 : vector<32x64xf32>
    %cst_74 = arith.constant dense<0.000000e+00> : vector<64xf32>
    %76 = vector.multi_reduction <add>, %75, %cst_74 [0] : vector<32x64xf32> to vector<64xf32>
    %77 = vector.shape_cast %76 : vector<64xf32> to vector<1x64xf32>
    %cst_75 = arith.constant 3.200000e+01 : f32
    %78 = vector.broadcast %cst_75 : f32 to vector<1x64xf32>
    %79 = arith.divf %77, %78 : vector<1x64xf32>
    %c0_76 = arith.constant 0 : index
    %c0_77 = arith.constant 0 : index
    %80 = vector.load %arg7[%c0_76, %c0_77] : memref<64x64xf32, #tpu.memory_space<vmem>>, vector<64x64xf32>
    %cst_78 = arith.constant dense<0.000000e+00> : vector<1x64xf32>
    %81 = tpu.matmul %79, %80, %cst_78 {dimension_numbers = #tpu.dot_dimension_numbers<[1], [0], [0], [1], [0, 0, 1, 1], [], []>} : vector<1x64xf32>, vector<64x64xf32>, vector<1x64xf32> -> vector<1x64xf32>
    %82 = vector.broadcast %81 : vector<1x64xf32> to vector<32x64xf32>
    %83 = arith.subf %75, %82 : vector<32x64xf32>
    %84 = arith.mulf %83, %83 : vector<32x64xf32>
    %cst_79 = arith.constant dense<0.000000e+00> : vector<64xf32>
    %85 = vector.multi_reduction <add>, %84, %cst_79 [0] : vector<32x64xf32> to vector<64xf32>
    %86 = vector.shape_cast %85 : vector<64xf32> to vector<1x64xf32>
    %cst_80 = arith.constant 3.200000e+01 : f32
    %87 = vector.broadcast %cst_80 : f32 to vector<1x64xf32>
    %88 = arith.divf %86, %87 : vector<1x64xf32>
    %c0_81 = arith.constant 0 : index
    %c0_82 = arith.constant 0 : index
    %89 = vector.load %arg7[%c0_81, %c0_82] : memref<64x64xf32, #tpu.memory_space<vmem>>, vector<64x64xf32>
    %cst_83 = arith.constant dense<0.000000e+00> : vector<1x64xf32>
    %90 = tpu.matmul %88, %89, %cst_83 {dimension_numbers = #tpu.dot_dimension_numbers<[1], [0], [0], [1], [0, 0, 1, 1], [], []>} : vector<1x64xf32>, vector<64x64xf32>, vector<1x64xf32> -> vector<1x64xf32>
    %c0_84 = arith.constant 0 : index
    %c0_85 = arith.constant 0 : index
    %91 = vector.load %arg8[%c0_84, %c0_85] : memref<1x64xf32, #tpu.memory_space<vmem>>, vector<1x64xf32>
    %cst_86 = arith.constant 9.99999974E-6 : f32
    %92 = vector.broadcast %cst_86 : f32 to vector<1x64xf32>
    %93 = arith.addf %90, %92 : vector<1x64xf32>
    %94 = math.rsqrt %93 : vector<1x64xf32>
    %95 = arith.mulf %91, %94 : vector<1x64xf32>
    %96 = vector.broadcast %95 : vector<1x64xf32> to vector<32x64xf32>
    %97 = arith.mulf %83, %96 : vector<32x64xf32>
    %c0_87 = arith.constant 0 : index
    %c0_88 = arith.constant 0 : index
    %98 = vector.load %arg9[%c0_87, %c0_88] : memref<1x64xf32, #tpu.memory_space<vmem>>, vector<1x64xf32>
    %99 = vector.broadcast %98 : vector<1x64xf32> to vector<32x64xf32>
    %100 = arith.addf %97, %99 : vector<32x64xf32>
    %cst_89 = arith.constant 0.000000e+00 : f32
    %101 = vector.broadcast %cst_89 : f32 to vector<32x64xf32>
    %102 = arith.cmpf ogt, %100, %101 : vector<32x64xf32>
    %cst_90 = arith.constant 0.00999999977 : f32
    %103 = vector.broadcast %cst_90 : f32 to vector<32x64xf32>
    %104 = arith.mulf %103, %100 : vector<32x64xf32>
    %105 = arith.select %102, %100, %104 : vector<32x64xi1>, vector<32x64xf32>
    %106 = vector.shape_cast %105 : vector<32x64xf32> to vector<2x16x64xf32>
    %c0_91 = arith.constant 0 : index
    %c0_92 = arith.constant 0 : index
    %c0_93 = arith.constant 0 : index
    %107 = vector.load %arg10[%c0_91, %c0_92, %c0_93] : memref<2x16x64xf32, #tpu.memory_space<vmem>>, vector<2x16x64xf32>
    tpu.vector_store %arg10[%c0_91, %c0_92, %c0_93], %106 {strides = array<i32>} : memref<2x16x64xf32, #tpu.memory_space<vmem>>, vector<2x16x64xf32>,
    return
  }
  func.func @transform_0(%arg0: i32) -> (i32, i32, i32) {
    %c0_i32 = arith.constant 0 : i32
    %c0_i32_0 = arith.constant 0 : i32
    %c0_i32_1 = arith.constant 0 : i32
    %c0_i32_2 = arith.constant 0 : i32
    return %c0_i32, %c0_i32_0, %c0_i32_1 : i32, i32, i32
  }
  func.func @transform_1(%arg0: i32) -> (i32, i32, i32) {
    %c0_i32 = arith.constant 0 : i32
    %c0_i32_0 = arith.constant 0 : i32
    %c0_i32_1 = arith.constant 0 : i32
    %c0_i32_2 = arith.constant 0 : i32
    return %c0_i32, %c0_i32_0, %c0_i32_1 : i32, i32, i32
  }
  func.func @transform_2(%arg0: i32) -> (i32, i32) {
    %c0_i32 = arith.constant 0 : i32
    %c0_i32_0 = arith.constant 0 : i32
    %c0_i32_1 = arith.constant 0 : i32
    return %c0_i32, %c0_i32_0 : i32, i32
  }
  func.func @transform_3(%arg0: i32) -> (i32, i32) {
    %c0_i32 = arith.constant 0 : i32
    %c0_i32_0 = arith.constant 0 : i32
    %c0_i32_1 = arith.constant 0 : i32
    return %c0_i32, %c0_i32_0 : i32, i32
  }
  func.func @transform_4(%arg0: i32) -> (i32, i32) {
    %c0_i32 = arith.constant 0 : i32
    %c0_i32_0 = arith.constant 0 : i32
    %c0_i32_1 = arith.constant 0 : i32
    return %c0_i32, %c0_i32_0 : i32, i32
  }
  func.func @transform_5(%arg0: i32) -> (i32, i32, i32) {
    %c0_i32 = arith.constant 0 : i32
    %c0_i32_0 = arith.constant 0 : i32
    %c0_i32_1 = arith.constant 0 : i32
    %c0_i32_2 = arith.constant 0 : i32
    return %c0_i32, %c0_i32_0, %c0_i32_1 : i32, i32, i32
  }
  func.func @transform_6(%arg0: i32) -> (i32, i32) {
    %c0_i32 = arith.constant 0 : i32
    %c0_i32_0 = arith.constant 0 : i32
    %c0_i32_1 = arith.constant 0 : i32
    return %c0_i32, %c0_i32_0 : i32, i32
  }
  func.func @transform_7(%arg0: i32) -> (i32, i32) {
    %c0_i32 = arith.constant 0 : i32
    %c0_i32_0 = arith.constant 0 : i32
    %c0_i32_1 = arith.constant 0 : i32
    return %c0_i32, %c0_i32_0 : i32, i32
  }
  func.func @transform_8(%arg0: i32) -> (i32, i32) {
    %c0_i32 = arith.constant 0 : i32
    %c0_i32_0 = arith.constant 0 : i32
    %c0_i32_1 = arith.constant 0 : i32
    return %c0_i32, %c0_i32_0 : i32, i32
  }
  func.func @transform_9(%arg0: i32) -> (i32, i32, i32) {
    %c0_i32 = arith.constant 0 : i32
    %c0_i32_0 = arith.constant 0 : i32
    %c0_i32_1 = arith.constant 0 : i32
    %c0_i32_2 = arith.constant 0 : i32
    return %c0_i32, %c0_i32_0, %c0_i32_1 : i32, i32, i32
  }
}

</mosaic_0001>

<llo_original>
// kernel: fin_conv_forward.1
$region0: #{fin_conv_forward.1}
  #allocation0 [shape = 'u32[]', space=smem, size = 0x4, offset = 0x4, fixed_abs, tag = 'smem constant byte address 0x4 - core index']
  #allocation1 [shape = 'u32[72,128]{1,0:T(1,128)}', space=vmem, size = 0x9000, scoped, tag = 'internal scratch']
  #allocation2 [shape = 'f32[2,18,64]{2,1,0:T(8,128)}', space=vmem, size = 0x6000, scoped, tag = 'scratch operand']
  #allocation3 [shape = 'f32[2,18,128]{2,1,0:T(8,128)}', space=vmem, size = 0x6000, scoped, tag = 'scratch operand']
  %s0 = inlined_call_operand.vmem [shape: f32[2,16,64], index: 0, kind: input, shape index: {}]
  %s1 = inlined_call_operand.vmem [shape: f32[3,64,128], index: 1, kind: input, shape index: {}]
  %s2 = inlined_call_operand.vmem [shape: f32[128,128], index: 2, kind: input, shape index: {}]
  %s3 = inlined_call_operand.vmem [shape: f32[1,128], index: 3, kind: input, shape index: {}]
  %s4 = inlined_call_operand.vmem [shape: f32[1,128], index: 4, kind: input, shape index: {}]
  %s5 = inlined_call_operand.vmem [shape: f32[3,128,64], index: 5, kind: input, shape index: {}]
  %s6 = inlined_call_operand.vmem [shape: f32[64,64], index: 6, kind: input, shape index: {}]
  %s7 = inlined_call_operand.vmem [shape: f32[1,64], index: 7, kind: input, shape index: {}]
  %s8 = inlined_call_operand.vmem [shape: f32[1,64], index: 8, kind: input, shape index: {}]
  %s9 = inlined_call_operand.vmem [shape: f32[2,16,64], index: 9, kind: output, shape index: {}]
  %s10 = sld [smem:[#allocation0]]
  $region46: #{fin_conv_forward.1} parent=0
    _
  %s12 = ssub.s32 1, %s10
  %s13 = scalar_select 0, %s12, %s10
  // Predicated region
  $region2: #{fin_conv_forward.1} parent=0 // pred_check
    _
  $region3: #{fin_conv_forward.1} parent=0 // pred_check_branch
    %15 = sbr.rel (0) target = $region5
  $region4: #{fin_conv_forward.1} parent=0 // pred_region
    _
  $region5: #{fin_conv_forward.1} parent=0 // pred_fallthru
    _
  // Predicated region
  $region6: #{fin_conv_forward.1} parent=0 // pred_check
    _
  $region7: #{fin_conv_forward.1} parent=0 // pred_check_branch
    %17 = sbr.rel (0) target = $region9
  $region8: #{fin_conv_forward.1} parent=0 // pred_region
    _
  $region9: #{fin_conv_forward.1} parent=0 // pred_fallthru
    _
  // Predicated region
  $region10: #{fin_conv_forward.1} parent=0 // pred_check
    _
  $region11: #{fin_conv_forward.1} parent=0 // pred_check_branch
    %19 = sbr.rel (0) target = $region13
  $region12: #{fin_conv_forward.1} parent=0 // pred_region
    _
  $region13: #{fin_conv_forward.1} parent=0 // pred_fallthru
    _
  // Predicated region
  $region14: #{fin_conv_forward.1} parent=0 // pred_check
    _
  $region15: #{fin_conv_forward.1} parent=0 // pred_check_branch
    %21 = sbr.rel (0) target = $region17
  $region16: #{fin_conv_forward.1} parent=0 // pred_region
    _
  $region17: #{fin_conv_forward.1} parent=0 // pred_fallthru
    _
  // Predicated region
  $region18: #{fin_conv_forward.1} parent=0 // pred_check
    _
  $region19: #{fin_conv_forward.1} parent=0 // pred_check_branch
    %23 = sbr.rel (0) target = $region21
  $region20: #{fin_conv_forward.1} parent=0 // pred_region
    _
  $region21: #{fin_conv_forward.1} parent=0 // pred_fallthru
    _
  // Predicated region
  $region22: #{fin_conv_forward.1} parent=0 // pred_check
    _
  $region23: #{fin_conv_forward.1} parent=0 // pred_check_branch
    %25 = sbr.rel (0) target = $region25
  $region24: #{fin_conv_forward.1} parent=0 // pred_region
    _
  $region25: #{fin_conv_forward.1} parent=0 // pred_fallthru
    _
  // Predicated region
  $region26: #{fin_conv_forward.1} parent=0 // pred_check
    _
  $region27: #{fin_conv_forward.1} parent=0 // pred_check_branch
    %27 = sbr.rel (0) target = $region29
  $region28: #{fin_conv_forward.1} parent=0 // pred_region
    _
  $region29: #{fin_conv_forward.1} parent=0 // pred_fallthru
    _
  // Predicated region
  $region30: #{fin_conv_forward.1} parent=0 // pred_check
    _
  $region31: #{fin_conv_forward.1} parent=0 // pred_check_branch
    %29 = sbr.rel (0) target = $region33
  $region32: #{fin_conv_forward.1} parent=0 // pred_region
    _
  $region33: #{fin_conv_forward.1} parent=0 // pred_fallthru
    _
  // Predicated region
  $region34: #{fin_conv_forward.1} parent=0 // pred_check
    _
  $region35: #{fin_conv_forward.1} parent=0 // pred_check_branch
    %31 = sbr.rel (0) target = $region37
  $region36: #{fin_conv_forward.1} parent=0 // pred_region
    _
  $region37: #{fin_conv_forward.1} parent=0 // pred_fallthru
    _
  %vm32 = vcmask 523264
  %33 = vst.msk [vmem:[#allocation2] sm:$0xff] %vm32, 0.0
  %34 = vst.msk [vmem:[#allocation2 + $0x8] sm:$0xff] %vm32, 0.0
  %vm35 = vcmask 517120
  %36 = vst.msk [vmem:[#allocation2 + $0x10] sm:$0x3] %vm35, 0.0
  %37 = vst.msk [vmem:[#allocation2 + $0x18] sm:$0xff] %vm32, 0.0
  %38 = vst.msk [vmem:[#allocation2 + $0x20] sm:$0xff] %vm32, 0.0
  %39 = vst.msk [vmem:[#allocation2 + $0x28] sm:$0x3] %vm35, 0.0
  %v40 = vld [vmem:[%s0] sm:$0xff]
  %v41 = vld [vmem:[%s0 + $0x8] sm:$0xff]
  %v42 = vld [vmem:[%s0 + $0x10] sm:$0xff]
  %v43 = vld [vmem:[%s0 + $0x18] sm:$0xff]
  %44 = vst.msk [vmem:[#allocation2 + $0x1] sm:$0xff] %vm32, %v40
  %45 = vst.msk [vmem:[#allocation2 + $0x9] sm:$0xff] %vm32, %v41
  %46 = vst.msk [vmem:[#allocation2 + $0x19] sm:$0xff] %vm32, %v42
  %47 = vst.msk [vmem:[#allocation2 + $0x21] sm:$0xff] %vm32, %v43
  %v48 = vld [vmem:[#allocation2] sm:$0xff]
  %v49 = vld [vmem:[#allocation2 + $0x8] sm:$0xff]
  %v50 = vld [vmem:[#allocation2 + $0x18] sm:$0xff]
  %v51 = vld [vmem:[#allocation2 + $0x20] sm:$0xff]
  %v52 = vld [vmem:[%s1] sm:$0xff]
  %v53 = vld [vmem:[%s1 + $0x8] sm:$0xff]
  %v54 = vld [vmem:[%s1 + $0x10] sm:$0xff]
  %v55 = vld [vmem:[%s1 + $0x18] sm:$0xff]
  %v56 = vld [vmem:[%s1 + $0x20] sm:$0xff]
  %v57 = vld [vmem:[%s1 + $0x28] sm:$0xff]
  %v58 = vld [vmem:[%s1 + $0x30] sm:$0xff]
  %v59 = vld [vmem:[%s1 + $0x38] sm:$0xff]
  %v60 = vld [vmem:[#allocation2 + $0x1] sm:$0xff]
  %v61 = vld [vmem:[#allocation2 + $0x9] sm:$0xff]
  %v62 = vld [vmem:[#allocation2 + $0x19] sm:$0xff]
  %v63 = vld [vmem:[#allocation2 + $0x21] sm:$0xff]
  %s64 = scalar_lea.vmem %s1, 64
  %v65 = vld [vmem:[%s64] sm:$0xff]
  %v66 = vld [vmem:[%s64 + $0x8] sm:$0xff]
  %v67 = vld [vmem:[%s64 + $0x10] sm:$0xff]
  %v68 = vld [vmem:[%s64 + $0x18] sm:$0xff]
  %v69 = vld [vmem:[%s64 + $0x20] sm:$0xff]
  %v70 = vld [vmem:[%s64 + $0x28] sm:$0xff]
  %v71 = vld [vmem:[%s64 + $0x30] sm:$0xff]
  %v72 = vld [vmem:[%s64 + $0x38] sm:$0xff]
  %v74 = vsel %vm32, %v60, 0
  %v77 = vsel %vm32, %v61, 0
  %v80 = vsel %vm32, %v62, 0
  %v83 = vsel %vm32, %v63, 0
  %85 = vmatpush.msra.mxu0 0.0
  %86 = vmatpush.msra.mxu0 0.0
  %87 = vmatpush.msra.mxu0 0.0
  %88 = vmatpush.msra.mxu0 0.0
  %89 = vmatpush.msra.mxu0 0.0
  %90 = vmatpush.msra.mxu0 0.0
  %91 = vmatpush.msra.mxu0 0.0
  %92 = vmatpush.msra.mxu0 0.0
  %93 = vmatpush.msra.mxu0 %v72
  %94 = vmatpush.msra.mxu0 %v71
  %95 = vmatpush.msra.mxu0 %v70
  %96 = vmatpush.msra.mxu0 %v69
  %97 = vmatpush.msra.mxu0 %v68
  %98 = vmatpush.msra.mxu0 %v67
  %99 = vmatpush.msra.mxu0 %v66
  %100 = vmatpush.msra.mxu0 %v65
  %101 = vmatmul.f32.gmra.mxu0 %v74
  %v102 = vpop.f32.mrf.mxu0
  %v103 = vadd.f32 0.0, %v102
  %104 = vmatmul.f32.gmra.mxu0 %v77
  %v105 = vpop.f32.mrf.mxu0
  %v106 = vadd.f32 0.0, %v105
  %107 = vmatmul.f32.gmra.mxu0 %v80
  %v108 = vpop.f32.mrf.mxu0
  %v109 = vadd.f32 0.0, %v108
  %110 = vmatmul.f32.gmra.mxu0 %v83
  %v111 = vpop.f32.mrf.mxu0
  %v112 = vadd.f32 0.0, %v111
  %113 = vdwg.mxu0
  %v115 = vsel %vm32, %v48, 0
  %v118 = vsel %vm32, %v49, 0
  %v121 = vsel %vm32, %v50, 0
  %v124 = vsel %vm32, %v51, 0
  %126 = vmatpush.msra.mxu0 0.0
  %127 = vmatpush.msra.mxu0 0.0
  %128 = vmatpush.msra.mxu0 0.0
  %129 = vmatpush.msra.mxu0 0.0
  %130 = vmatpush.msra.mxu0 0.0
  %131 = vmatpush.msra.mxu0 0.0
  %132 = vmatpush.msra.mxu0 0.0
  %133 = vmatpush.msra.mxu0 0.0
  %134 = vmatpush.msra.mxu0 %v59
  %135 = vmatpush.msra.mxu0 %v58
  %136 = vmatpush.msra.mxu0 %v57
  %137 = vmatpush.msra.mxu0 %v56
  %138 = vmatpush.msra.mxu0 %v55
  %139 = vmatpush.msra.mxu0 %v54
  %140 = vmatpush.msra.mxu0 %v53
  %141 = vmatpush.msra.mxu0 %v52
  %142 = vmatmul.f32.gmra.mxu0 %v115
  %v143 = vpop.f32.mrf.mxu0
  %v144 = vadd.f32 %v103, %v143
  %145 = vmatmul.f32.gmra.mxu0 %v118
  %v146 = vpop.f32.mrf.mxu0
  %v147 = vadd.f32 %v106, %v146
  %148 = vmatmul.f32.gmra.mxu0 %v121
  %v149 = vpop.f32.mrf.mxu0
  %v150 = vadd.f32 %v109, %v149
  %151 = vmatmul.f32.gmra.mxu0 %v124
  %v152 = vpop.f32.mrf.mxu0
  %v153 = vadd.f32 %v112, %v152
  %154 = vdwg.mxu0
  %v155 = vld [vmem:[#allocation2 + $0x2] sm:$0xff]
  %v156 = vld [vmem:[#allocation2 + $0xa] sm:$0xff]
  %v157 = vld [vmem:[#allocation2 + $0x1a] sm:$0xff]
  %v158 = vld [vmem:[#allocation2 + $0x22] sm:$0xff]
  %s159 = scalar_lea.vmem %s1, 128
  %v160 = vld [vmem:[%s159] sm:$0xff]
  %v161 = vld [vmem:[%s159 + $0x8] sm:$0xff]
  %v162 = vld [vmem:[%s159 + $0x10] sm:$0xff]
  %v163 = vld [vmem:[%s159 + $0x18] sm:$0xff]
  %v164 = vld [vmem:[%s159 + $0x20] sm:$0xff]
  %v165 = vld [vmem:[%s159 + $0x28] sm:$0xff]
  %v166 = vld [vmem:[%s159 + $0x30] sm:$0xff]
  %v167 = vld [vmem:[%s159 + $0x38] sm:$0xff]
  %v169 = vsel %vm32, %v155, 0
  %v172 = vsel %vm32, %v156, 0
  %v175 = vsel %vm32, %v157, 0
  %v178 = vsel %vm32, %v158, 0
  %180 = vmatpush.msra.mxu0 0.0
  %181 = vmatpush.msra.mxu0 0.0
  %182 = vmatpush.msra.mxu0 0.0
  %183 = vmatpush.msra.mxu0 0.0
  %184 = vmatpush.msra.mxu0 0.0
  %185 = vmatpush.msra.mxu0 0.0
  %186 = vmatpush.msra.mxu0 0.0
  %187 = vmatpush.msra.mxu0 0.0
  %188 = vmatpush.msra.mxu0 %v167
  %189 = vmatpush.msra.mxu0 %v166
  %190 = vmatpush.msra.mxu0 %v165
  %191 = vmatpush.msra.mxu0 %v164
  %192 = vmatpush.msra.mxu0 %v163
  %193 = vmatpush.msra.mxu0 %v162
  %194 = vmatpush.msra.mxu0 %v161
  %195 = vmatpush.msra.mxu0 %v160
  %196 = vmatmul.f32.gmra.mxu0 %v169
  %v197 = vpop.f32.mrf.mxu0
  %v198 = vadd.f32 0.0, %v197
  %199 = vmatmul.f32.gmra.mxu0 %v172
  %v200 = vpop.f32.mrf.mxu0
  %v201 = vadd.f32 0.0, %v200
  %202 = vmatmul.f32.gmra.mxu0 %v175
  %v203 = vpop.f32.mrf.mxu0
  %v204 = vadd.f32 0.0, %v203
  %205 = vmatmul.f32.gmra.mxu0 %v178
  %v206 = vpop.f32.mrf.mxu0
  %v207 = vadd.f32 0.0, %v206
  %208 = vdwg.mxu0
  %v209 = vadd.f32 %v144, %v198
  %v210 = vadd.f32 %v147, %v201
  %v211 = vadd.f32 %v150, %v204
  %v212 = vadd.f32 %v153, %v207
  %v213 = vadd.f32 %v209, %v210
  %v214 = vadd.f32 %v213, %v211
  %v215 = vadd.f32 %v214, %v212
  %v216 = vrot.slane %v215, 4
  %v217 = vadd.f32 %v215, %v216
  %v218 = vrot.slane %v217, 2
  %v219 = vadd.f32 %v217, %v218
  %v220 = vrot.slane %v219, 1
  %v221 = vadd.f32 %v219, %v220
  %v222 = vrcp.pop 32.0
  %v223 = vmul.f32 32.0, %v222
  %v224 = vsub.f32 1.0, %v223
  %v225 = vmul.f32 %v222, %v224
  %v226 = vadd.f32 %v222, %v225
  %vm227 = vweird.f32 %v222
  %v228 = vsel %vm227, %v222, %v226
  %v229 = vmul.f32 %v221, %v228
  %v230 = vld [vmem:[%s2] sm:$0xff]
  %v231 = vld [vmem:[%s2 + $0x8] sm:$0xff]
  %v232 = vld [vmem:[%s2 + $0x10] sm:$0xff]
  %v233 = vld [vmem:[%s2 + $0x18] sm:$0xff]
  %v234 = vld [vmem:[%s2 + $0x20] sm:$0xff]
  %v235 = vld [vmem:[%s2 + $0x28] sm:$0xff]
  %v236 = vld [vmem:[%s2 + $0x30] sm:$0xff]
  %v237 = vld [vmem:[%s2 + $0x38] sm:$0xff]
  %v238 = vld [vmem:[%s2 + $0x40] sm:$0xff]
  %v239 = vld [vmem:[%s2 + $0x48] sm:$0xff]
  %v240 = vld [vmem:[%s2 + $0x50] sm:$0xff]
  %v241 = vld [vmem:[%s2 + $0x58] sm:$0xff]
  %v242 = vld [vmem:[%s2 + $0x60] sm:$0xff]
  %v243 = vld [vmem:[%s2 + $0x68] sm:$0xff]
  %v244 = vld [vmem:[%s2 + $0x70] sm:$0xff]
  %v245 = vld [vmem:[%s2 + $0x78] sm:$0xff]
  %246 = vmatpush.msra.mxu0 %v245
  %247 = vmatpush.msra.mxu0 %v244
  %248 = vmatpush.msra.mxu0 %v243
  %249 = vmatpush.msra.mxu0 %v242
  %250 = vmatpush.msra.mxu0 %v241
  %251 = vmatpush.msra.mxu0 %v240
  %252 = vmatpush.msra.mxu0 %v239
  %253 = vmatpush.msra.mxu0 %v238
  %254 = vmatpush.msra.mxu0 %v237
  %255 = vmatpush.msra.mxu0 %v236
  %256 = vmatpush.msra.mxu0 %v235
  %257 = vmatpush.msra.mxu0 %v234
  %258 = vmatpush.msra.mxu0 %v233
  %259 = vmatpush.msra.mxu0 %v232
  %260 = vmatpush.msra.mxu0 %v231
  %261 = vmatpush.msra.mxu0 %v230
  %262 = vmatmul.f32.gmra.mxu0 %v229
  %v263 = vpop.f32.mrf.mxu0
  %v264 = vadd.f32 0.0, %v263
  %265 = vdwg.mxu0
  %v266 = vperm.slane %v264, 0
  %v267 = vsub.f32 %v209, %v266
  %v268 = vsub.f32 %v210, %v266
  %v269 = vsub.f32 %v211, %v266
  %v270 = vsub.f32 %v212, %v266
  %v271 = vmul.f32 %v267, %v267
  %v272 = vmul.f32 %v268, %v268
  %v273 = vmul.f32 %v269, %v269
  %v274 = vmul.f32 %v270, %v270
  %v275 = vadd.f32 %v271, %v272
  %v276 = vadd.f32 %v275, %v273
  %v277 = vadd.f32 %v276, %v274
  %v278 = vrot.slane %v277, 4
  %v279 = vadd.f32 %v277, %v278
  %v280 = vrot.slane %v279, 2
  %v281 = vadd.f32 %v279, %v280
  %v282 = vrot.slane %v281, 1
  %v283 = vadd.f32 %v281, %v282
  %v284 = vmul.f32 %v283, %v228
  %v285 = vld [vmem:[%s3] sm:$0x1]
  %286 = vmatpush.msra.mxu0 %v245
  %287 = vmatpush.msra.mxu0 %v244
  %288 = vmatpush.msra.mxu0 %v243
  %289 = vmatpush.msra.mxu0 %v242
  %290 = vmatpush.msra.mxu0 %v241
  %291 = vmatpush.msra.mxu0 %v240
  %292 = vmatpush.msra.mxu0 %v239
  %293 = vmatpush.msra.mxu0 %v238
  %294 = vmatpush.msra.mxu0 %v237
  %295 = vmatpush.msra.mxu0 %v236
  %296 = vmatpush.msra.mxu0 %v235
  %297 = vmatpush.msra.mxu0 %v234
  %298 = vmatpush.msra.mxu0 %v233
  %299 = vmatpush.msra.mxu0 %v232
  %300 = vmatpush.msra.mxu0 %v231
  %301 = vmatpush.msra.mxu0 %v230
  %302 = vmatmul.f32.gmra.mxu0 %v284
  %v303 = vpop.f32.mrf.mxu0
  %v304 = vadd.f32 1e-05, %v303
  %305 = vdwg.mxu0
  %v306 = vrsqrt.pop %v304
  %v307 = vmul.f32 %v306, %v304
  %v308 = vmul.f32 %v307, %v306
  %v309 = vmul.f32 0.5, %v308
  %v310 = vsub.f32 1.5, %v309
  %v311 = vmul.f32 %v306, %v310
  %vm312 = vweird.f32 %v304
  %vm313 = vweird.f32 %v306
  %vm314 = vmor %vm312, %vm313
  %v315 = vsel %vm314, %v306, %v311
  %v316 = vmul.f32 %v285, %v315
  %v318 = vperm.slane %v316, 0
  %v320 = vmul.f32 %v267, %v318
  %v321 = vmul.f32 %v268, %v318
  %v322 = vmul.f32 %v269, %v318
  %v323 = vmul.f32 %v270, %v318
  %v324 = vld [vmem:[%s4] sm:$0x1]
  %v326 = vperm.slane %v324, 0
  %v328 = vadd.f32 %v320, %v326
  %v329 = vadd.f32 %v321, %v326
  %v330 = vadd.f32 %v322, %v326
  %v331 = vadd.f32 %v323, %v326
  %vm332 = vcmp.gt.f32.partialorder %v328, 0.0
  %vm333 = vcmp.gt.f32.partialorder %v329, 0.0
  %vm334 = vcmp.gt.f32.partialorder %v330, 0.0
  %vm335 = vcmp.gt.f32.partialorder %v331, 0.0
  %v336 = vmul.f32 %v328, 0.01
  %v337 = vmul.f32 %v329, 0.01
  %v338 = vmul.f32 %v330, 0.01
  %v339 = vmul.f32 %v331, 0.01
  %v340 = vsel %vm332, %v328, %v336
  %v341 = vsel %vm333, %v329, %v337
  %v342 = vsel %vm334, %v330, %v338
  %v343 = vsel %vm335, %v331, %v339
  %344 = vst [vmem:[#allocation3] sm:$0xff] 0.0
  %345 = vst [vmem:[#allocation3 + $0x8] sm:$0xff] 0.0
  %346 = vst [vmem:[#allocation3 + $0x10] sm:$0x3] 0.0
  %347 = vst [vmem:[#allocation3 + $0x18] sm:$0xff] 0.0
  %348 = vst [vmem:[#allocation3 + $0x20] sm:$0xff] 0.0
  %349 = vst [vmem:[#allocation3 + $0x28] sm:$0x3] 0.0
  %350 = vst [vmem:[#allocation3 + $0x1] sm:$0xff] %v340
  %351 = vst [vmem:[#allocation3 + $0x9] sm:$0xff] %v341
  %352 = vst [vmem:[#allocation3 + $0x19] sm:$0xff] %v342
  %353 = vst [vmem:[#allocation3 + $0x21] sm:$0xff] %v343
  %v354 = vld [vmem:[#allocation3] sm:$0xff]
  %v355 = vld [vmem:[#allocation3 + $0x8] sm:$0xff]
  %v356 = vld [vmem:[#allocation3 + $0x18] sm:$0xff]
  %v357 = vld [vmem:[#allocation3 + $0x20] sm:$0xff]
  %v358 = vld [vmem:[%s5] sm:$0xff]
  %v359 = vld [vmem:[%s5 + $0x8] sm:$0xff]
  %v360 = vld [vmem:[%s5 + $0x10] sm:$0xff]
  %v361 = vld [vmem:[%s5 + $0x18] sm:$0xff]
  %v362 = vld [vmem:[%s5 + $0x20] sm:$0xff]
  %v363 = vld [vmem:[%s5 + $0x28] sm:$0xff]
  %v364 = vld [vmem:[%s5 + $0x30] sm:$0xff]
  %v365 = vld [vmem:[%s5 + $0x38] sm:$0xff]
  %v366 = vld [vmem:[%s5 + $0x40] sm:$0xff]
  %v367 = vld [vmem:[%s5 + $0x48] sm:$0xff]
  %v368 = vld [vmem:[%s5 + $0x50] sm:$0xff]
  %v369 = vld [vmem:[%s5 + $0x58] sm:$0xff]
  %v370 = vld [vmem:[%s5 + $0x60] sm:$0xff]
  %v371 = vld [vmem:[%s5 + $0x68] sm:$0xff]
  %v372 = vld [vmem:[%s5 + $0x70] sm:$0xff]
  %v373 = vld [vmem:[%s5 + $0x78] sm:$0xff]
  %v374 = vld [vmem:[#allocation3 + $0x1] sm:$0xff]
  %v375 = vld [vmem:[#allocation3 + $0x9] sm:$0xff]
  %v376 = vld [vmem:[#allocation3 + $0x19] sm:$0xff]
  %v377 = vld [vmem:[#allocation3 + $0x21] sm:$0xff]
  %s378 = scalar_lea.vmem %s5, 128
  %v379 = vld [vmem:[%s378] sm:$0xff]
  %v380 = vld [vmem:[%s378 + $0x8] sm:$0xff]
  %v381 = vld [vmem:[%s378 + $0x10] sm:$0xff]
  %v382 = vld [vmem:[%s378 + $0x18] sm:$0xff]
  %v383 = vld [vmem:[%s378 + $0x20] sm:$0xff]
  %v384 = vld [vmem:[%s378 + $0x28] sm:$0xff]
  %v385 = vld [vmem:[%s378 + $0x30] sm:$0xff]
  %v386 = vld [vmem:[%s378 + $0x38] sm:$0xff]
  %v387 = vld [vmem:[%s378 + $0x40] sm:$0xff]
  %v388 = vld [vmem:[%s378 + $0x48] sm:$0xff]
  %v389 = vld [vmem:[%s378 + $0x50] sm:$0xff]
  %v390 = vld [vmem:[%s378 + $0x58] sm:$0xff]
  %v391 = vld [vmem:[%s378 + $0x60] sm:$0xff]
  %v392 = vld [vmem:[%s378 + $0x68] sm:$0xff]
  %v393 = vld [vmem:[%s378 + $0x70] sm:$0xff]
  %v394 = vld [vmem:[%s378 + $0x78] sm:$0xff]
  %395 = vmatpush.msra.mxu0 %v394
  %396 = vmatpush.msra.mxu0 %v393
  %397 = vmatpush.msra.mxu0 %v392
  %398 = vmatpush.msra.mxu0 %v391
  %399 = vmatpush.msra.mxu0 %v390
  %400 = vmatpush.msra.mxu0 %v389
  %401 = vmatpush.msra.mxu0 %v388
  %402 = vmatpush.msra.mxu0 %v387
  %403 = vmatpush.msra.mxu0 %v386
  %404 = vmatpush.msra.mxu0 %v385
  %405 = vmatpush.msra.mxu0 %v384
  %406 = vmatpush.msra.mxu0 %v383
  %407 = vmatpush.msra.mxu0 %v382
  %408 = vmatpush.msra.mxu0 %v381
  %409 = vmatpush.msra.mxu0 %v380
  %410 = vmatpush.msra.mxu0 %v379
  %411 = vmatmul.f32.gmra.mxu0 %v374
  %v412 = vpop.f32.mrf.mxu0
  %v413 = vadd.f32 0.0, %v412
  %414 = vmatmul.f32.gmra.mxu0 %v375
  %v415 = vpop.f32.mrf.mxu0
  %v416 = vadd.f32 0.0, %v415
  %417 = vmatmul.f32.gmra.mxu0 %v376
  %v418 = vpop.f32.mrf.mxu0
  %v419 = vadd.f32 0.0, %v418
  %420 = vmatmul.f32.gmra.mxu0 %v377
  %v421 = vpop.f32.mrf.mxu0
  %v422 = vadd.f32 0.0, %v421
  %423 = vdwg.mxu0
  %424 = vmatpush.msra.mxu0 %v373
  %425 = vmatpush.msra.mxu0 %v372
  %426 = vmatpush.msra.mxu0 %v371
  %427 = vmatpush.msra.mxu0 %v370
  %428 = vmatpush.msra.mxu0 %v369
  %429 = vmatpush.msra.mxu0 %v368
  %430 = vmatpush.msra.mxu0 %v367
  %431 = vmatpush.msra.mxu0 %v366
  %432 = vmatpush.msra.mxu0 %v365
  %433 = vmatpush.msra.mxu0 %v364
  %434 = vmatpush.msra.mxu0 %v363
  %435 = vmatpush.msra.mxu0 %v362
  %436 = vmatpush.msra.mxu0 %v361
  %437 = vmatpush.msra.mxu0 %v360
  %438 = vmatpush.msra.mxu0 %v359
  %439 = vmatpush.msra.mxu0 %v358
  %440 = vmatmul.f32.gmra.mxu0 %v354
  %v441 = vpop.f32.mrf.mxu0
  %v442 = vadd.f32 %v413, %v441
  %443 = vmatmul.f32.gmra.mxu0 %v355
  %v444 = vpop.f32.mrf.mxu0
  %v445 = vadd.f32 %v416, %v444
  %446 = vmatmul.f32.gmra.mxu0 %v356
  %v447 = vpop.f32.mrf.mxu0
  %v448 = vadd.f32 %v419, %v447
  %449 = vmatmul.f32.gmra.mxu0 %v357
  %v450 = vpop.f32.mrf.mxu0
  %v451 = vadd.f32 %v422, %v450
  %452 = vdwg.mxu0
  %v453 = vld [vmem:[#allocation3 + $0x2] sm:$0xff]
  %v454 = vld [vmem:[#allocation3 + $0xa] sm:$0xff]
  %v455 = vld [vmem:[#allocation3 + $0x1a] sm:$0xff]
  %v456 = vld [vmem:[#allocation3 + $0x22] sm:$0xff]
  %s457 = scalar_lea.vmem %s5, 256
  %v458 = vld [vmem:[%s457] sm:$0xff]
  %v459 = vld [vmem:[%s457 + $0x8] sm:$0xff]
  %v460 = vld [vmem:[%s457 + $0x10] sm:$0xff]
  %v461 = vld [vmem:[%s457 + $0x18] sm:$0xff]
  %v462 = vld [vmem:[%s457 + $0x20] sm:$0xff]
  %v463 = vld [vmem:[%s457 + $0x28] sm:$0xff]
  %v464 = vld [vmem:[%s457 + $0x30] sm:$0xff]
  %v465 = vld [vmem:[%s457 + $0x38] sm:$0xff]
  %v466 = vld [vmem:[%s457 + $0x40] sm:$0xff]
  %v467 = vld [vmem:[%s457 + $0x48] sm:$0xff]
  %v468 = vld [vmem:[%s457 + $0x50] sm:$0xff]
  %v469 = vld [vmem:[%s457 + $0x58] sm:$0xff]
  %v470 = vld [vmem:[%s457 + $0x60] sm:$0xff]
  %v471 = vld [vmem:[%s457 + $0x68] sm:$0xff]
  %v472 = vld [vmem:[%s457 + $0x70] sm:$0xff]
  %v473 = vld [vmem:[%s457 + $0x78] sm:$0xff]
  %474 = vmatpush.msra.mxu0 %v473
  %475 = vmatpush.msra.mxu0 %v472
  %476 = vmatpush.msra.mxu0 %v471
  %477 = vmatpush.msra.mxu0 %v470
  %478 = vmatpush.msra.mxu0 %v469
  %479 = vmatpush.msra.mxu0 %v468
  %480 = vmatpush.msra.mxu0 %v467
  %481 = vmatpush.msra.mxu0 %v466
  %482 = vmatpush.msra.mxu0 %v465
  %483 = vmatpush.msra.mxu0 %v464
  %484 = vmatpush.msra.mxu0 %v463
  %485 = vmatpush.msra.mxu0 %v462
  %486 = vmatpush.msra.mxu0 %v461
  %487 = vmatpush.msra.mxu0 %v460
  %488 = vmatpush.msra.mxu0 %v459
  %489 = vmatpush.msra.mxu0 %v458
  %490 = vmatmul.f32.gmra.mxu0 %v453
  %v491 = vpop.f32.mrf.mxu0
  %v492 = vadd.f32 0.0, %v491
  %493 = vmatmul.f32.gmra.mxu0 %v454
  %v494 = vpop.f32.mrf.mxu0
  %v495 = vadd.f32 0.0, %v494
  %496 = vmatmul.f32.gmra.mxu0 %v455
  %v497 = vpop.f32.mrf.mxu0
  %v498 = vadd.f32 0.0, %v497
  %499 = vmatmul.f32.gmra.mxu0 %v456
  %v500 = vpop.f32.mrf.mxu0
  %v501 = vadd.f32 0.0, %v500
  %502 = vdwg.mxu0
  %v503 = vadd.f32 %v442, %v492
  %v504 = vadd.f32 %v445, %v495
  %v505 = vadd.f32 %v448, %v498
  %v506 = vadd.f32 %v451, %v501
  %v507 = vsel %vm32, %v503, 0.0
  %v508 = vsel %vm32, %v504, 0.0
  %v509 = vadd.f32 %v507, %v508
  %v510 = vsel %vm32, %v505, 0.0
  %v511 = vadd.f32 %v509, %v510
  %v512 = vsel %vm32, %v506, 0.0
  %v513 = vadd.f32 %v511, %v512
  %v514 = vrot.slane %v513, 4
  %v515 = vadd.f32 %v513, %v514
  %v516 = vrot.slane %v515, 2
  %v517 = vadd.f32 %v515, %v516
  %v518 = vrot.slane %v517, 1
  %v519 = vadd.f32 %v517, %v518
  %v520 = vmul.f32 %v519, %v228
  %v521 = vld [vmem:[%s6] sm:$0xff]
  %v522 = vld [vmem:[%s6 + $0x8] sm:$0xff]
  %v523 = vld [vmem:[%s6 + $0x10] sm:$0xff]
  %v524 = vld [vmem:[%s6 + $0x18] sm:$0xff]
  %v525 = vld [vmem:[%s6 + $0x20] sm:$0xff]
  %v526 = vld [vmem:[%s6 + $0x28] sm:$0xff]
  %v527 = vld [vmem:[%s6 + $0x30] sm:$0xff]
  %v528 = vld [vmem:[%s6 + $0x38] sm:$0xff]
  %v530 = vsel %vm32, %v520, 0
  %532 = vmatpush.msra.mxu0 0.0
  %533 = vmatpush.msra.mxu0 0.0
  %534 = vmatpush.msra.mxu0 0.0
  %535 = vmatpush.msra.mxu0 0.0
  %536 = vmatpush.msra.mxu0 0.0
  %537 = vmatpush.msra.mxu0 0.0
  %538 = vmatpush.msra.mxu0 0.0
  %539 = vmatpush.msra.mxu0 0.0
  %540 = vmatpush.msra.mxu0 %v528
  %541 = vmatpush.msra.mxu0 %v527
  %542 = vmatpush.msra.mxu0 %v526
  %543 = vmatpush.msra.mxu0 %v525
  %544 = vmatpush.msra.mxu0 %v524
  %545 = vmatpush.msra.mxu0 %v523
  %546 = vmatpush.msra.mxu0 %v522
  %547 = vmatpush.msra.mxu0 %v521
  %548 = vmatmul.f32.gmra.mxu0 %v530
  %v549 = vpop.f32.mrf.mxu0
  %v550 = vadd.f32 0.0, %v549
  %551 = vdwg.mxu0
  %v552 = vperm.slane %v550, 0
  %v553 = vsub.f32 %v503, %v552
  %v554 = vsub.f32 %v504, %v552
  %v555 = vsub.f32 %v505, %v552
  %v556 = vsub.f32 %v506, %v552
  %v557 = vmul.f32 %v553, %v553
  %v558 = vmul.f32 %v554, %v554
  %v559 = vmul.f32 %v555, %v555
  %v560 = vmul.f32 %v556, %v556
  %v561 = vsel %vm32, %v557, 0.0
  %v562 = vsel %vm32, %v558, 0.0
  %v563 = vadd.f32 %v561, %v562
  %v564 = vsel %vm32, %v559, 0.0
  %v565 = vadd.f32 %v563, %v564
  %v566 = vsel %vm32, %v560, 0.0
  %v567 = vadd.f32 %v565, %v566
  %v568 = vrot.slane %v567, 4
  %v569 = vadd.f32 %v567, %v568
  %v570 = vrot.slane %v569, 2
  %v571 = vadd.f32 %v569, %v570
  %v572 = vrot.slane %v571, 1
  %v573 = vadd.f32 %v571, %v572
  %v574 = vmul.f32 %v573, %v228
  %v575 = vld [vmem:[%s7] sm:$0x1]
  %v577 = vsel %vm32, %v574, 0
  %579 = vmatpush.msra.mxu0 0.0
  %580 = vmatpush.msra.mxu0 0.0
  %581 = vmatpush.msra.mxu0 0.0
  %582 = vmatpush.msra.mxu0 0.0
  %583 = vmatpush.msra.mxu0 0.0
  %584 = vmatpush.msra.mxu0 0.0
  %585 = vmatpush.msra.mxu0 0.0
  %586 = vmatpush.msra.mxu0 0.0
  %587 = vmatpush.msra.mxu0 %v528
  %588 = vmatpush.msra.mxu0 %v527
  %589 = vmatpush.msra.mxu0 %v526
  %590 = vmatpush.msra.mxu0 %v525
  %591 = vmatpush.msra.mxu0 %v524
  %592 = vmatpush.msra.mxu0 %v523
  %593 = vmatpush.msra.mxu0 %v522
  %594 = vmatpush.msra.mxu0 %v521
  %595 = vmatmul.f32.gmra.mxu0 %v577
  %v596 = vpop.f32.mrf.mxu0
  %v597 = vadd.f32 1e-05, %v596
  %598 = vdwg.mxu0
  %v599 = vrsqrt.pop %v597
  %v600 = vmul.f32 %v599, %v597
  %v601 = vmul.f32 %v600, %v599
  %v602 = vmul.f32 0.5, %v601
  %v603 = vsub.f32 1.5, %v602
  %v604 = vmul.f32 %v599, %v603
  %vm605 = vweird.f32 %v597
  %vm606 = vweird.f32 %v599
  %vm607 = vmor %vm605, %vm606
  %v608 = vsel %vm607, %v599, %v604
  %v609 = vmul.f32 %v575, %v608
  %v611 = vperm.slane %v609, 0
  %v613 = vmul.f32 %v553, %v611
  %v614 = vmul.f32 %v554, %v611
  %v615 = vmul.f32 %v555, %v611
  %v616 = vmul.f32 %v556, %v611
  %v617 = vld [vmem:[%s8] sm:$0x1]
  %v619 = vperm.slane %v617, 0
  %v621 = vadd.f32 %v613, %v619
  %v622 = vadd.f32 %v614, %v619
  %v623 = vadd.f32 %v615, %v619
  %v624 = vadd.f32 %v616, %v619
  %vm625 = vcmp.gt.f32.partialorder %v621, 0.0
  %vm626 = vcmp.gt.f32.partialorder %v622, 0.0
  %vm627 = vcmp.gt.f32.partialorder %v623, 0.0
  %vm628 = vcmp.gt.f32.partialorder %v624, 0.0
  %v629 = vmul.f32 %v621, 0.01
  %v630 = vmul.f32 %v622, 0.01
  %v631 = vmul.f32 %v623, 0.01
  %v632 = vmul.f32 %v624, 0.01
  %v633 = vsel %vm625, %v621, %v629
  %v634 = vsel %vm626, %v622, %v630
  %v635 = vsel %vm627, %v623, %v631
  %v636 = vsel %vm628, %v624, %v632
  %637 = vst.msk [vmem:[%s9] sm:$0xff] %vm32, %v633
  %638 = vst.msk [vmem:[%s9 + $0x8] sm:$0xff] %vm32, %v634
  %639 = vst.msk [vmem:[%s9 + $0x10] sm:$0xff] %vm32, %v635
  %640 = vst.msk [vmem:[%s9 + $0x18] sm:$0xff] %vm32, %v636
  // Predicated region
  $region38: #{fin_conv_forward.1} parent=0 // pred_check
    _
  $region39: #{fin_conv_forward.1} parent=0 // pred_check_branch
    %642 = sbr.rel (0) target = $region41
  $region40: #{fin_conv_forward.1} parent=0 // pred_region
    _
  $region41: #{fin_conv_forward.1} parent=0 // pred_fallthru
    _
  // Predicated region
  $region42: #{fin_conv_forward.1} parent=0 // pred_check
    _
  $region43: #{fin_conv_forward.1} parent=0 // pred_check_branch
    %644 = sbr.rel (0) target = $region45
  $region44: #{fin_conv_forward.1} parent=0 // pred_region
    _
  $region45: #{fin_conv_forward.1} parent=0 // pred_fallthru
    _

</llo_original>
